<compile_context>
chip_gen: v5e
topology: v5e:2x2
jax: 0.10.0
libtpu: 0.0.40
codegen_flags: <defaults>
</compile_context>

<pallas_src>
import functools
import math

import numpy as np
import jax
import jax.numpy as jnp
from jax.experimental import pallas as pl
from jax.experimental.pallas import tpu as pltpu

_EPS = 1e-8                     # F.cosine_similarity eps (clamp n1*n2 at eps^2)
_MXU_DTYPE = jnp.bfloat16       # native MXU input dtype; accumulation stays f32
_FEATURE_DTYPE = jnp.bfloat16   # features fed to the HBM-bound cosine kernel


# ----------------------------------------------------------------------------
# Host-side matrix builders (deterministic, derived from sigma / image_size)
# ----------------------------------------------------------------------------
def _bilinear_matrix(n_out: int, n_in: int) -> np.ndarray:
    """1D bilinear resize (align_corners=True) as a row-stochastic matrix."""
    M = np.zeros((n_out, n_in), dtype=np.float64)
    if n_out == 1 or n_in == 1:
        M[:, 0] = 1.0
        return M
    scale = (n_in - 1) / (n_out - 1)
    for i in range(n_out):
        src = i * scale
        i0 = min(max(int(math.floor(src)), 0), n_in - 1)
        i1 = min(i0 + 1, n_in - 1)
        frac = src - i0
        M[i, i0] += 1.0 - frac
        M[i, i1] += frac
    return M


def _reflect_index(p: int, n: int) -> int:
    if n == 1:
        return 0
    period = 2 * (n - 1)
    p = p % period
    if p >= n:
        p = period - p
    return p


def _gaussian_blur_matrix(n: int, ksize: int, sigma: float) -> np.ndarray:
    """1D gaussian blur (kornia-normalized kernel, 'reflect' border) as a matrix."""
    x = np.arange(ksize, dtype=np.float64) - (ksize - 1) / 2.0
    g = np.exp(-(x ** 2) / (2.0 * sigma ** 2))
    g = g / g.sum()
    pad = ksize // 2
    M = np.zeros((n, n), dtype=np.float64)
    for i in range(n):
        for k in range(ksize):
            M[i, _reflect_index(i + k - pad, n)] += g[k]
    return M


def _row_tile(n: int, target: int) -> int:
    """Largest divisor of n that is <= target and a multiple of 8 (else n)."""
    if n <= target:
        return n
    for t in range(target, 7, -1):
        if n % t == 0 and t % 8 == 0:
            return t
    return n


def _vmem_limit(nbytes: int) -> int:
    """Clamp a computed VMEM requirement to a safe scoped-VMEM request."""
    return int(min(max(nbytes, 32 * 1024 * 1024), 64 * 1024 * 1024))


# ----------------------------------------------------------------------------
# Pallas kernels
# ----------------------------------------------------------------------------
def _cosine_dist_kernel(*refs, n_levels):
    """refs = [s_0, t_0, ..., s_{L-1}, t_{L-1}, dist_0, ..., dist_{L-1}].

    One grid step = one batch element.  s_l / t_l refs are lane-dense
    (C_l, h_l*w_l) bf16 blocks; dist_l out refs are (1, h_l*w_l) f32.
    """
    for l in range(n_levels):
        s = refs[2 * l][...].astype(jnp.float32)          # (C, h*w)
        t = refs[2 * l + 1][...].astype(jnp.float32)      # (C, h*w)
        dot = jnp.sum(s * t, axis=0, keepdims=True)       # (1, h*w)
        n1 = jnp.sum(s * s, axis=0, keepdims=True)
        n2 = jnp.sum(t * t, axis=0, keepdims=True)
        # 1 - cosine_similarity (torch-style product clamp); rsqrt -> EUP slot.
        inv = jax.lax.rsqrt(jnp.maximum(n1 * n2, _EPS * _EPS))
        refs[2 * n_levels + l][...] = 1.0 - dot * inv


def _upsample_combine_blur_kernel(*refs, n_levels, mode, blur):
    """refs = [d_0, A_0, Bt_0, ..., d_{L-1}, A_{L-1}, Bt_{L-1},
               (Gh, Gwt if blur), out]

    Grid = (batch, H-row-tile).  Matmul order is (d @ Bt) then (A @ .), so all
    intermediates are lane-dense (minor dim = W) and MXU N = W.
      d_l: (h_l, w_l) f32 ; Bt_l: (w_l, W) bf16 ; out: (tH, W) f32
      A_l: (tH, h_l) bf16 when blur is composed ("add"), (H, h_l) otherwise
      Gh : (tH, H) bf16 ; Gwt: (W, W) bf16 (only in "multiply" mode)
    """
    out_ref = refs[-1]
    agg = None
    for l in range(n_levels):
        d = refs[3 * l][...].astype(_MXU_DTYPE)            # (h, w)
        a = refs[3 * l + 1][...]                           # (tH | H, h)
        bt = refs[3 * l + 2][...]                          # (w, W)
        u = jnp.dot(d, bt, preferred_element_type=jnp.float32)           # (h, W)
        u = jnp.dot(a, u.astype(_MXU_DTYPE),
                    preferred_element_type=jnp.float32)                  # (tH|H, W)
        if agg is None:
            agg = u
        elif mode == "multiply":
            agg = agg * u
        else:
            agg = agg + u
    if blur:  # mode == "multiply": blur cannot be composed, apply it here.
        gh = refs[3 * n_levels][...]                       # (tH, H)
        gwt = refs[3 * n_levels + 1][...]                  # (W, W)
        b1 = jnp.dot(gh, agg.astype(_MXU_DTYPE),
                     preferred_element_type=jnp.float32)                 # (tH, W)
        agg = jnp.dot(b1.astype(_MXU_DTYPE), gwt,
                      preferred_element_type=jnp.float32)                # (tH, W)
    out_ref[...] = agg


# ----------------------------------------------------------------------------
# pallas_call wrappers
# ----------------------------------------------------------------------------
def _cosine_distances(s_flat, t_flat):
    """s_flat/t_flat: lists of (B, C_l, h_l*w_l) bf16.  Returns (B, 1, h_l*w_l) f32."""
    B = s_flat[0].shape[0]
    n_levels = len(s_flat)
    args, in_specs, out_shapes, out_specs = [], [], [], []
    vmem = 0
    max_tmp = 0
    for s, t in zip(s_flat, t_flat):
        _, C, hw = s.shape
        spec = pl.BlockSpec((pl.Squeezed(), C, hw), lambda b: (b, 0, 0))
        args += [s, t]
        in_specs += [spec, spec]
        out_shapes.append(jax.ShapeDtypeStruct((B, 1, hw), jnp.float32))
        out_specs.append(pl.BlockSpec((pl.Squeezed(), 1, hw), lambda b: (b, 0, 0)))
        isz = jnp.dtype(s.dtype).itemsize
        vmem += 2 * (2 * C * hw * isz + hw * 4)        # double-buffered s,t + out
        max_tmp = max(max_tmp, 2 * C * hw * 4)         # in-kernel f32 upcasts
    vmem += max_tmp + 2 * 1024 * 1024
    # TODO(synk): if this ever exceeds physical VMEM (very wide backbones),
    # add an hw-chunk grid axis instead of relying on vmem_limit_bytes alone.
    return pl.pallas_call(
        functools.partial(_cosine_dist_kernel, n_levels=n_levels),
        out_shape=tuple(out_shapes),
        grid=(B,),
        in_specs=in_specs,
        out_specs=tuple(out_specs),
        compiler_params=pltpu.CompilerParams(
            dimension_semantics=("parallel",),
            vmem_limit_bytes=_vmem_limit(vmem)),
    )(*args)


def _upsample_combine_blur(dists, mats, gh, gwt, mode):
    """dists: list of (B, h_l, w_l) f32; mats: list of (A_l, Bt_l) bf16;
    gh/gwt: (H, H)/(W, W) bf16 or None (blur composed into mats for "add").
    Returns (B, H, W) f32."""
    B = dists[0].shape[0]
    H = mats[0][0].shape[0]
    W = mats[0][1].shape[1]
    blur = gh is not None
    # Larger row tile in multiply mode: the full combined map is rebuilt per
    # tile there, so fewer tiles = less redundant (cheap) per-level work.
    tH = _row_tile(H, 512 if blur else 256)
    n_tiles = H // tH

    args, in_specs = [], []
    vmem = 0
    for d, (a, bt) in zip(dists, mats):
        _, h, w = d.shape
        args += [d, a, bt]
        in_specs.append(pl.BlockSpec((pl.Squeezed(), h, w), lambda b, i: (b, 0, 0)))
        if blur:
            # multiply: row blur needs the full combined map -> A_l untiled.
            in_specs.append(pl.BlockSpec((H, h), lambda b, i: (0, 0)))
            a_rows = H
        else:
            # add: blur composed into A_l -> A_l rows tile with the output rows.
            in_specs.append(pl.BlockSpec((tH, h), lambda b, i: (i, 0)))
            a_rows = tH
        in_specs.append(pl.BlockSpec((w, W), lambda b, i: (0, 0)))
        vmem += 2 * (h * w * 4 + a_rows * h * 2 + w * W * 2)
    if blur:
        args += [gh, gwt]
        in_specs += [pl.BlockSpec((tH, H), lambda b, i: (i, 0)),
                     pl.BlockSpec((W, W), lambda b, i: (0, 0))]
        vmem += 2 * (tH * H * 2 + W * W * 2)
    vmem += 2 * (tH * W * 4)                      # double-buffered output tile
    vmem += 2 * ((H if blur else tH) * W * 4)     # live agg / u intermediates
    vmem += 2 * 1024 * 1024

    return pl.pallas_call(
        functools.partial(_upsample_combine_blur_kernel,
                          n_levels=len(dists), mode=mode, blur=blur),
        out_shape=jax.ShapeDtypeStruct((B, H, W), jnp.float32),
        grid=(B, n_tiles),
        in_specs=in_specs,
        out_specs=pl.BlockSpec((pl.Squeezed(), tH, W), lambda b, i: (b, i, 0)),
        compiler_params=pltpu.CompilerParams(
            dimension_semantics=("parallel", "parallel"),
            vmem_limit_bytes=_vmem_limit(vmem)),
    )(*args)


# ----------------------------------------------------------------------------
# Module wrapper
# ----------------------------------------------------------------------------
class AnomalyMapGeneratorPallas:
    """Pallas TPU port of anomalib's AnomalyMapGenerator forward pass."""

    def __init__(self, image_size, sigma: int = 4, mode: str = "multiply"):
        self.image_size = tuple(image_size)
        self.sigma = sigma
        self.kernel_size = 2 * int(4.0 * sigma + 0.5) + 1
        if mode not in ("add", "multiply"):
            raise ValueError(f"Found mode {mode}. Only multiply and add are supported.")
        self.mode = mode
        H, W = self.image_size
        pad = self.kernel_size // 2
        if pad >= min(H, W):
            # torch reflect padding raises in this regime; keep the same contract.
            raise ValueError(f"kernel_size={self.kernel_size} requires image dims > {pad}.")
        self._gh_np = _gaussian_blur_matrix(H, self.kernel_size, sigma)
        self._gw_np = _gaussian_blur_matrix(W, self.kernel_size, sigma)
        if mode == "multiply":
            self.gh = jnp.asarray(self._gh_np, _MXU_DTYPE)
            self.gwt = jnp.asarray(self._gw_np.T, _MXU_DTYPE)
        else:  # "add": blur is composed into the per-level upsample matrices
            self.gh = None
            self.gwt = None
        self._level_mats = {}

    def _matrices_for(self, h, w):
        key = (h, w)
        if key not in self._level_mats:
            H, W = self.image_size
            L = _bilinear_matrix(H, h)
            R = _bilinear_matrix(W, w)
            if self.mode == "add":
                # Gh @ (sum_l L_l D_l R_l^T) @ Gw^T = sum_l (Gh@L_l) D_l (Gw@R_l)^T
                A, Bt = self._gh_np @ L, (self._gw_np @ R).T
            else:
                A, Bt = L, R.T
            self._level_mats[key] = (jnp.asarray(A, _MXU_DTYPE),
                                     jnp.asarray(Bt, _MXU_DTYPE))
        return self._level_mats[key]

    def __call__(self, student_features, teacher_features):
        if not student_features or len(student_features) != len(teacher_features):
            raise ValueError("student/teacher feature lists must be equal-length, non-empty.")
        H, W = self.image_size
        B = student_features[0].shape[0]
        shapes = [tuple(s.shape) for s in student_features]

        # Kernel 1: per-level cosine distance on lane-dense (B, C, h*w) blocks.
        # Features are fed as bf16 (kernel is HBM-bandwidth bound); the NCHW
        # reshape is free (no data movement).
        s_flat = [s.astype(_FEATURE_DTYPE).reshape(B, shp[1], shp[2] * shp[3])
                  for s, shp in zip(student_features, shapes)]
        t_flat = [t.astype(_FEATURE_DTYPE).reshape(B, shp[1], shp[2] * shp[3])
                  for t, shp in zip(teacher_features, shapes)]
        dists_flat = _cosine_distances(s_flat, t_flat)        # list of (B, 1, h*w)

        # Free HBM reshape back to (B, h, w) for the matmul kernel.
        dists = [d.reshape(B, shp[2], shp[3]) for d, shp in zip(dists_flat, shapes)]
        mats = [self._matrices_for(shp[2], shp[3]) for shp in shapes]

        # Kernel 2: upsample + combine + (blur, unless composed for "add").
        out = _upsample_combine_blur(dists, mats, self.gh, self.gwt, self.mode)
        return out.reshape(B, 1, H, W)


# ----------------------------------------------------------------------------
# Pure-JAX reference for the self-test
# ----------------------------------------------------------------------------
def reference_forward(student, teacher, image_size, sigma, mode,
                      matmul_dtype=jnp.float32, feature_dtype=jnp.float32):
    """matmul_dtype/feature_dtype=bfloat16 mirrors the kernel's casts (and its
    matmul order); float32 everywhere is the torch-faithful reference."""
    H, W = image_size
    ksize = 2 * int(4.0 * sigma + 0.5) + 1
    gh = _gaussian_blur_matrix(H, ksize, sigma)
    gw = _gaussian_blur_matrix(W, ksize, sigma)
    agg = None
    for s, t in zip(student, teacher):
        s = jnp.asarray(s).astype(feature_dtype).astype(jnp.float32)
        t = jnp.asarray(t).astype(feature_dtype).astype(jnp.float32)
        dot = jnp.sum(s * t, axis=1)
        n1 = jnp.sum(s * s, axis=1)
        n2 = jnp.sum(t * t, axis=1)
        dist = 1.0 - dot * jax.lax.rsqrt(jnp.maximum(n1 * n2, _EPS * _EPS))  # (B,h,w)
        _, _, h, w = s.shape
        L = _bilinear_matrix(H, h)
        R = _bilinear_matrix(W, w)
        if mode == "add":
            A, Bt = gh @ L, (gw @ R).T
        else:
            A, Bt = L, R.T
        A = jnp.asarray(A, matmul_dtype)
        Bt = jnp.asarray(Bt, matmul_dtype)
        # Same order as the kernel: (d @ Bt) then (A @ .).
        u = jnp.einsum("bhw,wW->bhW", dist.astype(matmul_dtype), Bt,
                       preferred_element_type=jnp.float32)
        u = jnp.einsum("Hh,bhW->bHW", A, u.astype(matmul_dtype),
                       preferred_element_type=jnp.float32)
        agg = u if agg is None else (agg * u if mode == "multiply" else agg + u)
    if mode == "multiply":
        ghj = jnp.asarray(gh, matmul_dtype)
        gwtj = jnp.asarray(gw.T, matmul_dtype)
        b1 = jnp.einsum("GH,bHW->bGW", ghj, agg.astype(matmul_dtype),
                        preferred_element_type=jnp.float32)
        agg = jnp.einsum("bGW,WV->bGV", b1.astype(matmul_dtype), gwtj,
                         preferred_element_type=jnp.float32)
    return agg[:, None, :, :]


if __name__ == "__main__":
    key = jax.random.PRNGKey(0)
    B = 2
    image_size = (32, 32)   # kernel_size = 33 (sigma=4) -> reflect pad 16 < 32
    sigma = 4
    feat_shapes = [(B, 16, 16, 16), (B, 32, 8, 8), (B, 64, 4, 4)]

    keys = jax.random.split(key, 2 * len(feat_shapes))
    student = [jax.random.normal(keys[2 * i], shp, dtype=jnp.float32)
               for i, shp in enumerate(feat_shapes)]
    teacher = [jax.random.normal(keys[2 * i + 1], shp, dtype=jnp.float32)
               for i, shp in enumerate(feat_shapes)]

    for mode in ("multiply", "add"):
        gen = AnomalyMapGeneratorPallas(image_size, sigma=sigma, mode=mode)
        out = jax.block_until_ready(gen(student, teacher))
        assert out.shape == (B, 1, *image_size)

        # Check vs. a pure-JAX reference mirroring the kernel's bf16 casts and
        # matmul order (residual diff is only f32 reduction order / rare bf16
        # rounding flips of equal f32 values).
        ref_bf16 = reference_forward(student, teacher, image_size, sigma, mode,
                                     matmul_dtype=_MXU_DTYPE,
                                     feature_dtype=_FEATURE_DTYPE)
        np.testing.assert_allclose(np.asarray(out), np.asarray(ref_bf16),
                                   rtol=1e-2, atol=1e-2)
        # Looser check vs. the full-f32 torch-faithful reference.
        ref_f32 = reference_forward(student, teacher, image_size, sigma, mode)
        np.testing.assert_allclose(np.asarray(out), np.asarray(ref_f32),
                                   rtol=1e-1, atol=5e-2)

    print("KERNEL_OK")
</pallas_src>

<mosaic_0001>
module attributes {stable_mosaic.version = 11 : i64} {
  func.func @_cosine_dist_kernel(%arg0: i32, %arg1: memref<1x16x256xbf16, #tpu.memory_space<vmem>>, %arg2: memref<1x16x256xbf16, #tpu.memory_space<vmem>>, %arg3: memref<1x32x64xbf16, #tpu.memory_space<vmem>>, %arg4: memref<1x32x64xbf16, #tpu.memory_space<vmem>>, %arg5: memref<1x64x16xbf16, #tpu.memory_space<vmem>>, %arg6: memref<1x64x16xbf16, #tpu.memory_space<vmem>>, %arg7: memref<1x1x256xf32, #tpu.memory_space<vmem>>, %arg8: memref<1x1x64xf32, #tpu.memory_space<vmem>>, %arg9: memref<1x1x16xf32, #tpu.memory_space<vmem>>) attributes {dimension_semantics = [#tpu.dimension_semantics<parallel>], iteration_bounds = array<i64: 2>, scalar_prefetch = 0 : i64, scratch_operands = 0 : i64, tpu.core_type = #tpu.core_type<tc>, window_params = [{transform_indices = @transform_0, window_bounds = array<i64: 1, 16, 256>}, {transform_indices = @transform_1, window_bounds = array<i64: 1, 16, 256>}, {transform_indices = @transform_2, window_bounds = array<i64: 1, 32, 64>}, {transform_indices = @transform_3, window_bounds = array<i64: 1, 32, 64>}, {transform_indices = @transform_4, window_bounds = array<i64: 1, 64, 16>}, {transform_indices = @transform_5, window_bounds = array<i64: 1, 64, 16>}, {transform_indices = @transform_6, window_bounds = array<i64: 1, 1, 256>}, {transform_indices = @transform_7, window_bounds = array<i64: 1, 1, 64>}, {transform_indices = @transform_8, window_bounds = array<i64: 1, 1, 16>}]} {
    %c0 = arith.constant 0 : index
    %c0_0 = arith.constant 0 : index
    %c0_1 = arith.constant 0 : index
    %0 = vector.load %arg1[%c0, %c0_0, %c0_1] : memref<1x16x256xbf16, #tpu.memory_space<vmem>>, vector<1x16x256xbf16>
    %1 = vector.shape_cast %0 : vector<1x16x256xbf16> to vector<16x256xbf16>
    %2 = arith.extf %1 : vector<16x256xbf16> to vector<16x256xf32>
    %c0_2 = arith.constant 0 : index
    %c0_3 = arith.constant 0 : index
    %c0_4 = arith.constant 0 : index
    %3 = vector.load %arg2[%c0_2, %c0_3, %c0_4] : memref<1x16x256xbf16, #tpu.memory_space<vmem>>, vector<1x16x256xbf16>
    %4 = vector.shape_cast %3 : vector<1x16x256xbf16> to vector<16x256xbf16>
    %5 = arith.extf %4 : vector<16x256xbf16> to vector<16x256xf32>
    %6 = arith.mulf %2, %5 : vector<16x256xf32>
    %cst = arith.constant dense<0.000000e+00> : vector<256xf32>
    %7 = vector.multi_reduction <add>, %6, %cst [0] : vector<16x256xf32> to vector<256xf32>
    %8 = vector.shape_cast %7 : vector<256xf32> to vector<1x256xf32>
    %9 = arith.mulf %2, %2 : vector<16x256xf32>
    %cst_5 = arith.constant dense<0.000000e+00> : vector<256xf32>
    %10 = vector.multi_reduction <add>, %9, %cst_5 [0] : vector<16x256xf32> to vector<256xf32>
    %11 = vector.shape_cast %10 : vector<256xf32> to vector<1x256xf32>
    %12 = arith.mulf %5, %5 : vector<16x256xf32>
    %cst_6 = arith.constant dense<0.000000e+00> : vector<256xf32>
    %13 = vector.multi_reduction <add>, %12, %cst_6 [0] : vector<16x256xf32> to vector<256xf32>
    %14 = vector.shape_cast %13 : vector<256xf32> to vector<1x256xf32>
    %15 = arith.mulf %11, %14 : vector<1x256xf32>
    %cst_7 = arith.constant 1.000000e-16 : f32
    %16 = vector.broadcast %cst_7 : f32 to vector<1x256xf32>
    %17 = arith.maximumf %15, %16 : vector<1x256xf32>
    %18 = math.rsqrt %17 : vector<1x256xf32>
    %19 = arith.mulf %8, %18 : vector<1x256xf32>
    %cst_8 = arith.constant 1.000000e+00 : f32
    %20 = vector.broadcast %cst_8 : f32 to vector<1x256xf32>
    %21 = arith.subf %20, %19 : vector<1x256xf32>
    %c0_9 = arith.constant 0 : index
    %c0_10 = arith.constant 0 : index
    %c0_11 = arith.constant 0 : index
    %22 = vector.load %arg7[%c0_9, %c0_10, %c0_11] : memref<1x1x256xf32, #tpu.memory_space<vmem>>, vector<1x1x256xf32>
    %23 = vector.shape_cast %22 : vector<1x1x256xf32> to vector<1x256xf32>
    %24 = vector.shape_cast %21 : vector<1x256xf32> to vector<1x1x256xf32>
    tpu.vector_store %arg7[%c0_9, %c0_10, %c0_11], %24 {strides = array<i32>} : memref<1x1x256xf32, #tpu.memory_space<vmem>>, vector<1x1x256xf32>,
    %c0_12 = arith.constant 0 : index
    %c0_13 = arith.constant 0 : index
    %c0_14 = arith.constant 0 : index
    %25 = vector.load %arg3[%c0_12, %c0_13, %c0_14] : memref<1x32x64xbf16, #tpu.memory_space<vmem>>, vector<1x32x64xbf16>
    %26 = vector.shape_cast %25 : vector<1x32x64xbf16> to vector<32x64xbf16>
    %27 = arith.extf %26 : vector<32x64xbf16> to vector<32x64xf32>
    %c0_15 = arith.constant 0 : index
    %c0_16 = arith.constant 0 : index
    %c0_17 = arith.constant 0 : index
    %28 = vector.load %arg4[%c0_15, %c0_16, %c0_17] : memref<1x32x64xbf16, #tpu.memory_space<vmem>>, vector<1x32x64xbf16>
    %29 = vector.shape_cast %28 : vector<1x32x64xbf16> to vector<32x64xbf16>
    %30 = arith.extf %29 : vector<32x64xbf16> to vector<32x64xf32>
    %31 = arith.mulf %27, %30 : vector<32x64xf32>
    %cst_18 = arith.constant dense<0.000000e+00> : vector<64xf32>
    %32 = vector.multi_reduction <add>, %31, %cst_18 [0] : vector<32x64xf32> to vector<64xf32>
    %33 = vector.shape_cast %32 : vector<64xf32> to vector<1x64xf32>
    %34 = arith.mulf %27, %27 : vector<32x64xf32>
    %cst_19 = arith.constant dense<0.000000e+00> : vector<64xf32>
    %35 = vector.multi_reduction <add>, %34, %cst_19 [0] : vector<32x64xf32> to vector<64xf32>
    %36 = vector.shape_cast %35 : vector<64xf32> to vector<1x64xf32>
    %37 = arith.mulf %30, %30 : vector<32x64xf32>
    %cst_20 = arith.constant dense<0.000000e+00> : vector<64xf32>
    %38 = vector.multi_reduction <add>, %37, %cst_20 [0] : vector<32x64xf32> to vector<64xf32>
    %39 = vector.shape_cast %38 : vector<64xf32> to vector<1x64xf32>
    %40 = arith.mulf %36, %39 : vector<1x64xf32>
    %cst_21 = arith.constant 1.000000e-16 : f32
    %41 = vector.broadcast %cst_21 : f32 to vector<1x64xf32>
    %42 = arith.maximumf %40, %41 : vector<1x64xf32>
    %43 = math.rsqrt %42 : vector<1x64xf32>
    %44 = arith.mulf %33, %43 : vector<1x64xf32>
    %cst_22 = arith.constant 1.000000e+00 : f32
    %45 = vector.broadcast %cst_22 : f32 to vector<1x64xf32>
    %46 = arith.subf %45, %44 : vector<1x64xf32>
    %c0_23 = arith.constant 0 : index
    %c0_24 = arith.constant 0 : index
    %c0_25 = arith.constant 0 : index
    %47 = vector.load %arg8[%c0_23, %c0_24, %c0_25] : memref<1x1x64xf32, #tpu.memory_space<vmem>>, vector<1x1x64xf32>
    %48 = vector.shape_cast %47 : vector<1x1x64xf32> to vector<1x64xf32>
    %49 = vector.shape_cast %46 : vector<1x64xf32> to vector<1x1x64xf32>
    tpu.vector_store %arg8[%c0_23, %c0_24, %c0_25], %49 {strides = array<i32>} : memref<1x1x64xf32, #tpu.memory_space<vmem>>, vector<1x1x64xf32>,
    %c0_26 = arith.constant 0 : index
    %c0_27 = arith.constant 0 : index
    %c0_28 = arith.constant 0 : index
    %50 = vector.load %arg5[%c0_26, %c0_27, %c0_28] : memref<1x64x16xbf16, #tpu.memory_space<vmem>>, vector<1x64x16xbf16>
    %51 = vector.shape_cast %50 : vector<1x64x16xbf16> to vector<64x16xbf16>
    %52 = arith.extf %51 : vector<64x16xbf16> to vector<64x16xf32>
    %c0_29 = arith.constant 0 : index
    %c0_30 = arith.constant 0 : index
    %c0_31 = arith.constant 0 : index
    %53 = vector.load %arg6[%c0_29, %c0_30, %c0_31] : memref<1x64x16xbf16, #tpu.memory_space<vmem>>, vector<1x64x16xbf16>
    %54 = vector.shape_cast %53 : vector<1x64x16xbf16> to vector<64x16xbf16>
    %55 = arith.extf %54 : vector<64x16xbf16> to vector<64x16xf32>
    %56 = arith.mulf %52, %55 : vector<64x16xf32>
    %cst_32 = arith.constant dense<0.000000e+00> : vector<16xf32>
    %57 = vector.multi_reduction <add>, %56, %cst_32 [0] : vector<64x16xf32> to vector<16xf32>
    %58 = vector.shape_cast %57 : vector<16xf32> to vector<1x16xf32>
    %59 = arith.mulf %52, %52 : vector<64x16xf32>
    %cst_33 = arith.constant dense<0.000000e+00> : vector<16xf32>
    %60 = vector.multi_reduction <add>, %59, %cst_33 [0] : vector<64x16xf32> to vector<16xf32>
    %61 = vector.shape_cast %60 : vector<16xf32> to vector<1x16xf32>
    %62 = arith.mulf %55, %55 : vector<64x16xf32>
    %cst_34 = arith.constant dense<0.000000e+00> : vector<16xf32>
    %63 = vector.multi_reduction <add>, %62, %cst_34 [0] : vector<64x16xf32> to vector<16xf32>
    %64 = vector.shape_cast %63 : vector<16xf32> to vector<1x16xf32>
    %65 = arith.mulf %61, %64 : vector<1x16xf32>
    %cst_35 = arith.constant 1.000000e-16 : f32
    %66 = vector.broadcast %cst_35 : f32 to vector<1x16xf32>
    %67 = arith.maximumf %65, %66 : vector<1x16xf32>
    %68 = math.rsqrt %67 : vector<1x16xf32>
    %69 = arith.mulf %58, %68 : vector<1x16xf32>
    %cst_36 = arith.constant 1.000000e+00 : f32
    %70 = vector.broadcast %cst_36 : f32 to vector<1x16xf32>
    %71 = arith.subf %70, %69 : vector<1x16xf32>
    %c0_37 = arith.constant 0 : index
    %c0_38 = arith.constant 0 : index
    %c0_39 = arith.constant 0 : index
    %72 = vector.load %arg9[%c0_37, %c0_38, %c0_39] : memref<1x1x16xf32, #tpu.memory_space<vmem>>, vector<1x1x16xf32>
    %73 = vector.shape_cast %72 : vector<1x1x16xf32> to vector<1x16xf32>
    %74 = vector.shape_cast %71 : vector<1x16xf32> to vector<1x1x16xf32>
    tpu.vector_store %arg9[%c0_37, %c0_38, %c0_39], %74 {strides = array<i32>} : memref<1x1x16xf32, #tpu.memory_space<vmem>>, vector<1x1x16xf32>,
    return
  }
  func.func @transform_0(%arg0: i32) -> (i32, i32, i32) {
    %c0_i32 = arith.constant 0 : i32
    %c0_i32_0 = arith.constant 0 : i32
    %c0_i32_1 = arith.constant 0 : i32
    return %arg0, %c0_i32, %c0_i32_0 : i32, i32, i32
  }
  func.func @transform_1(%arg0: i32) -> (i32, i32, i32) {
    %c0_i32 = arith.constant 0 : i32
    %c0_i32_0 = arith.constant 0 : i32
    %c0_i32_1 = arith.constant 0 : i32
    return %arg0, %c0_i32, %c0_i32_0 : i32, i32, i32
  }
  func.func @transform_2(%arg0: i32) -> (i32, i32, i32) {
    %c0_i32 = arith.constant 0 : i32
    %c0_i32_0 = arith.constant 0 : i32
    %c0_i32_1 = arith.constant 0 : i32
    return %arg0, %c0_i32, %c0_i32_0 : i32, i32, i32
  }
  func.func @transform_3(%arg0: i32) -> (i32, i32, i32) {
    %c0_i32 = arith.constant 0 : i32
    %c0_i32_0 = arith.constant 0 : i32
    %c0_i32_1 = arith.constant 0 : i32
    return %arg0, %c0_i32, %c0_i32_0 : i32, i32, i32
  }
  func.func @transform_4(%arg0: i32) -> (i32, i32, i32) {
    %c0_i32 = arith.constant 0 : i32
    %c0_i32_0 = arith.constant 0 : i32
    %c0_i32_1 = arith.constant 0 : i32
    return %arg0, %c0_i32, %c0_i32_0 : i32, i32, i32
  }
  func.func @transform_5(%arg0: i32) -> (i32, i32, i32) {
    %c0_i32 = arith.constant 0 : i32
    %c0_i32_0 = arith.constant 0 : i32
    %c0_i32_1 = arith.constant 0 : i32
    return %arg0, %c0_i32, %c0_i32_0 : i32, i32, i32
  }
  func.func @transform_6(%arg0: i32) -> (i32, i32, i32) {
    %c0_i32 = arith.constant 0 : i32
    %c0_i32_0 = arith.constant 0 : i32
    %c0_i32_1 = arith.constant 0 : i32
    return %arg0, %c0_i32, %c0_i32_0 : i32, i32, i32
  }
  func.func @transform_7(%arg0: i32) -> (i32, i32, i32) {
    %c0_i32 = arith.constant 0 : i32
    %c0_i32_0 = arith.constant 0 : i32
    %c0_i32_1 = arith.constant 0 : i32
    return %arg0, %c0_i32, %c0_i32_0 : i32, i32, i32
  }
  func.func @transform_8(%arg0: i32) -> (i32, i32, i32) {
    %c0_i32 = arith.constant 0 : i32
    %c0_i32_0 = arith.constant 0 : i32
    %c0_i32_1 = arith.constant 0 : i32
    return %arg0, %c0_i32, %c0_i32_0 : i32, i32, i32
  }
}

</mosaic_0001>

<llo_original>
// kernel: tpu_custom_call.1
$region0: #{tpu_custom_call.1}
  #allocation0 [shape = 'u32[]', space=smem, size = 0x4, offset = 0x4, fixed_abs, tag = 'smem constant byte address 0x4 - core index']
  #allocation1 [shape = 'u32[72,128]{1,0:T(1,128)}', space=vmem, size = 0x9000, scoped, tag = 'internal scratch']
  %s0 = inlined_call_operand.vmem [shape: bf16[2,16,256], index: 0, kind: input, shape index: {}]
  %s1 = inlined_call_operand.vmem [shape: bf16[2,16,256], index: 1, kind: input, shape index: {}]
  %s2 = inlined_call_operand.vmem [shape: bf16[2,32,64], index: 2, kind: input, shape index: {}]
  %s3 = inlined_call_operand.vmem [shape: bf16[2,32,64], index: 3, kind: input, shape index: {}]
  %s4 = inlined_call_operand.vmem [shape: bf16[2,64,16], index: 4, kind: input, shape index: {}]
  %s5 = inlined_call_operand.vmem [shape: bf16[2,64,16], index: 5, kind: input, shape index: {}]
  %s6 = inlined_call_operand.hbm [shape: f32[2,1,256], index: 6, kind: output, shape index: {0}]
  %s7 = inlined_call_operand.hbm [shape: f32[2,1,64], index: 7, kind: output, shape index: {1}]
  %s8 = inlined_call_operand.hbm [shape: f32[2,1,16], index: 8, kind: output, shape index: {2}]
  %9 = xla_tuple %s6, %s7, %s8
  %s10 = sld [smem:[#allocation0]]
  $region73: #{tpu_custom_call.1} parent=0
    _
  %s12 = ssub.s32 1, %s10
  %s13 = scalar_select 0, %s12, %s10
  $region1: #{tpu_custom_call.1} parent=0
    #allocation2 [shape = 'u8[2048]{0}', space=vmem, size = 0x800, scoped, tag = 'output window, operand 0']
    #allocation3 [shape = 's32[2]{0}', space=sflag, size = 0x8, scoped, tag = 'scoped memory for tpu_custom_call.1']
    #allocation4 [shape = 'u8[1024]{0}', space=vmem, size = 0x400, scoped, tag = 'output window, operand 1']
    #allocation5 [shape = 's32[2]{0}', space=sflag, size = 0x8, scoped, tag = 'scoped memory for tpu_custom_call.1']
    #allocation6 [shape = 'u8[1024]{0}', space=vmem, size = 0x400, scoped, tag = 'output window, operand 2']
    %14 = vsyncpa [#allocation3], 0
    %s15 = scalar_lea.sflag [#allocation3], 1
    %16 = vsyncpa %s15, 0
    %17 = vsyncpa [#allocation5], 0
    %s18 = scalar_lea.sflag [#allocation5], 1
    %19 = vsyncpa %s18, 0
    loop: start=0, step=1, limit=4
    $region2: #{tpu_custom_call.1} parent=1 // loop_pre_header
      _
    $region3: #{tpu_custom_call.1} parent=1 // loop_header
      %s21 = sphi 0, %s25
      %p22 = scmp.ge.s32.totalorder %s21, 4
      %s31 = sphi 0, %s33
      %s34 = sphi 0, %s31
      %s35 = sphi 0, %s34
      %s51 = sphi 0, %s35
      %s57 = sphi 0, %s59
      %s60 = sphi 0, %s57
      %s61 = sphi 0, %s60
      %s77 = sphi 0, %s61
      %s83 = sphi 0, %s85
      %s86 = sphi 0, %s83
      %s87 = sphi 0, %s86
      %s103 = sphi 0, %s87
      %s109 = sphi 0, %s111
      %s112 = sphi 0, %s109
      %s113 = sphi 0, %s112
      %s129 = sphi 0, %s113
      %s135 = sphi 0, %s137
      %s138 = sphi 0, %s135
      %s139 = sphi 0, %s138
      %s155 = sphi 0, %s139
      %s161 = sphi 0, %s163
      %s164 = sphi 0, %s161
      %s165 = sphi 0, %s164
      %s181 = sphi 0, %s165
      %s187 = sphi 0, %s189
      %s190 = sphi 0, %s187
      %s191 = sphi 0, %s190
      %s207 = sphi 0, %s191
      %s213 = sphi 0, %s215
      %s216 = sphi 0, %s213
      %s217 = sphi 0, %s216
      %s233 = sphi 0, %s217
      %s239 = sphi 0, %s241
      %s242 = sphi 0, %s239
      %s243 = sphi 0, %s242
      %s259 = sphi 0, %s243
    $region4: #{tpu_custom_call.1} parent=1 // loop_header_branch
      %24 = sbr.rel (%p22) target = $region8
    $region5: #{tpu_custom_call.1} parent=1 // loop_body
      %s26 = ssub.s32 %s21, 1
      %s27 = ssub.s32 %s21, 2
      %s28 = sadd.s32 %s21, 1
      %s29 = ssub.s32 %s21, %s28
      %p30 = scmp.eq.s32.totalorder %s29, 0
      %s32 = sadd.s32 %s31, 1
      %s33 = scalar_select %p30, %s31, %s32
      %p36 = pneg %p30
      %p37 = scmp.eq.s32.totalorder %s21, 1
      %p38 = por %p36, %p37
      %p39 = scmp.ne.s32.totalorder %s31, %s34
      %p40 = scmp.eq.s32.totalorder %s21, 0
      %p41 = por %p39, %p40
      %p42 = scmp.ne.s32.totalorder %s31, %s34
      %p43 = scmp.eq.s32.totalorder %s26, 1
      %p44 = por %p42, %p43
      %p45 = scmp.ne.s32.totalorder %s34, %s35
      %p46 = scmp.eq.s32.totalorder %s26, 0
      %p47 = por %p45, %p46
      %p48 = scmp.ne.s32.totalorder %s34, %s35
      %p49 = scmp.eq.s32.totalorder %s27, 1
      %p50 = por %p48, %p49
      %p52 = scmp.ne.s32.totalorder %s35, %s51
      %p53 = scmp.eq.s32.totalorder %s27, 0
      %p54 = por %p52, %p53
      %s55 = ssub.s32 %s21, %s28
      %p56 = scmp.eq.s32.totalorder %s55, 0
      %s58 = sadd.s32 %s57, 1
      %s59 = scalar_select %p56, %s57, %s58
      %p62 = pneg %p56
      %p63 = scmp.eq.s32.totalorder %s21, 1
      %p64 = por %p62, %p63
      %p65 = scmp.ne.s32.totalorder %s57, %s60
      %p66 = scmp.eq.s32.totalorder %s21, 0
      %p67 = por %p65, %p66
      %p68 = scmp.ne.s32.totalorder %s57, %s60
      %p69 = scmp.eq.s32.totalorder %s26, 1
      %p70 = por %p68, %p69
      %p71 = scmp.ne.s32.totalorder %s60, %s61
      %p72 = scmp.eq.s32.totalorder %s26, 0
      %p73 = por %p71, %p72
      %p74 = scmp.ne.s32.totalorder %s60, %s61
      %p75 = scmp.eq.s32.totalorder %s27, 1
      %p76 = por %p74, %p75
      %p78 = scmp.ne.s32.totalorder %s61, %s77
      %p79 = scmp.eq.s32.totalorder %s27, 0
      %p80 = por %p78, %p79
      %s81 = ssub.s32 %s21, %s28
      %p82 = scmp.eq.s32.totalorder %s81, 0
      %s84 = sadd.s32 %s83, 1
      %s85 = scalar_select %p82, %s83, %s84
      %p88 = pneg %p82
      %p89 = scmp.eq.s32.totalorder %s21, 1
      %p90 = por %p88, %p89
      %p91 = scmp.ne.s32.totalorder %s83, %s86
      %p92 = scmp.eq.s32.totalorder %s21, 0
      %p93 = por %p91, %p92
      %p94 = scmp.ne.s32.totalorder %s83, %s86
      %p95 = scmp.eq.s32.totalorder %s26, 1
      %p96 = por %p94, %p95
      %p97 = scmp.ne.s32.totalorder %s86, %s87
      %p98 = scmp.eq.s32.totalorder %s26, 0
      %p99 = por %p97, %p98
      %p100 = scmp.ne.s32.totalorder %s86, %s87
      %p101 = scmp.eq.s32.totalorder %s27, 1
      %p102 = por %p100, %p101
      %p104 = scmp.ne.s32.totalorder %s87, %s103
      %p105 = scmp.eq.s32.totalorder %s27, 0
      %p106 = por %p104, %p105
      %s107 = ssub.s32 %s21, %s28
      %p108 = scmp.eq.s32.totalorder %s107, 0
      %s110 = sadd.s32 %s109, 1
      %s111 = scalar_select %p108, %s109, %s110
      %p114 = pneg %p108
      %p115 = scmp.eq.s32.totalorder %s21, 1
      %p116 = por %p114, %p115
      %p117 = scmp.ne.s32.totalorder %s109, %s112
      %p118 = scmp.eq.s32.totalorder %s21, 0
      %p119 = por %p117, %p118
      %p120 = scmp.ne.s32.totalorder %s109, %s112
      %p121 = scmp.eq.s32.totalorder %s26, 1
      %p122 = por %p120, %p121
      %p123 = scmp.ne.s32.totalorder %s112, %s113
      %p124 = scmp.eq.s32.totalorder %s26, 0
      %p125 = por %p123, %p124
      %p126 = scmp.ne.s32.totalorder %s112, %s113
      %p127 = scmp.eq.s32.totalorder %s27, 1
      %p128 = por %p126, %p127
      %p130 = scmp.ne.s32.totalorder %s113, %s129
      %p131 = scmp.eq.s32.totalorder %s27, 0
      %p132 = por %p130, %p131
      %s133 = ssub.s32 %s21, %s28
      %p134 = scmp.eq.s32.totalorder %s133, 0
      %s136 = sadd.s32 %s135, 1
      %s137 = scalar_select %p134, %s135, %s136
      %p140 = pneg %p134
      %p141 = scmp.eq.s32.totalorder %s21, 1
      %p142 = por %p140, %p141
      %p143 = scmp.ne.s32.totalorder %s135, %s138
      %p144 = scmp.eq.s32.totalorder %s21, 0
      %p145 = por %p143, %p144
      %p146 = scmp.ne.s32.totalorder %s135, %s138
      %p147 = scmp.eq.s32.totalorder %s26, 1
      %p148 = por %p146, %p147
      %p149 = scmp.ne.s32.totalorder %s138, %s139
      %p150 = scmp.eq.s32.totalorder %s26, 0
      %p151 = por %p149, %p150
      %p152 = scmp.ne.s32.totalorder %s138, %s139
      %p153 = scmp.eq.s32.totalorder %s27, 1
      %p154 = por %p152, %p153
      %p156 = scmp.ne.s32.totalorder %s139, %s155
      %p157 = scmp.eq.s32.totalorder %s27, 0
      %p158 = por %p156, %p157
      %s159 = ssub.s32 %s21, %s28
      %p160 = scmp.eq.s32.totalorder %s159, 0
      %s162 = sadd.s32 %s161, 1
      %s163 = scalar_select %p160, %s161, %s162
      %p166 = pneg %p160
      %p167 = scmp.eq.s32.totalorder %s21, 1
      %p168 = por %p166, %p167
      %p169 = scmp.ne.s32.totalorder %s161, %s164
      %p170 = scmp.eq.s32.totalorder %s21, 0
      %p171 = por %p169, %p170
      %p172 = scmp.ne.s32.totalorder %s161, %s164
      %p173 = scmp.eq.s32.totalorder %s26, 1
      %p174 = por %p172, %p173
      %p175 = scmp.ne.s32.totalorder %s164, %s165
      %p176 = scmp.eq.s32.totalorder %s26, 0
      %p177 = por %p175, %p176
      %p178 = scmp.ne.s32.totalorder %s164, %s165
      %p179 = scmp.eq.s32.totalorder %s27, 1
      %p180 = por %p178, %p179
      %p182 = scmp.ne.s32.totalorder %s165, %s181
      %p183 = scmp.eq.s32.totalorder %s27, 0
      %p184 = por %p182, %p183
      %s185 = ssub.s32 %s21, %s28
      %p186 = scmp.eq.s32.totalorder %s185, 0
      %s188 = sadd.s32 %s187, 1
      %s189 = scalar_select %p186, %s187, %s188
      %p192 = pneg %p186
      %p193 = scmp.eq.s32.totalorder %s21, 1
      %p194 = por %p192, %p193
      %p195 = scmp.ne.s32.totalorder %s187, %s190
      %p196 = scmp.eq.s32.totalorder %s21, 0
      %p197 = por %p195, %p196
      %p198 = scmp.ne.s32.totalorder %s187, %s190
      %p199 = scmp.eq.s32.totalorder %s26, 1
      %p200 = por %p198, %p199
      %p201 = scmp.ne.s32.totalorder %s190, %s191
      %p202 = scmp.eq.s32.totalorder %s26, 0
      %p203 = por %p201, %p202
      %p204 = scmp.ne.s32.totalorder %s190, %s191
      %p205 = scmp.eq.s32.totalorder %s27, 1
      %p206 = por %p204, %p205
      %p208 = scmp.ne.s32.totalorder %s191, %s207
      %p209 = scmp.eq.s32.totalorder %s27, 0
      %p210 = por %p208, %p209
      %s211 = ssub.s32 %s21, %s28
      %p212 = scmp.eq.s32.totalorder %s211, 0
      %s214 = sadd.s32 %s213, 1
      %s215 = scalar_select %p212, %s213, %s214
      %p218 = pneg %p212
      %p219 = scmp.eq.s32.totalorder %s21, 1
      %p220 = por %p218, %p219
      %p221 = scmp.ne.s32.totalorder %s213, %s216
      %p222 = scmp.eq.s32.totalorder %s21, 0
      %p223 = por %p221, %p222
      %p224 = scmp.ne.s32.totalorder %s213, %s216
      %p225 = scmp.eq.s32.totalorder %s26, 1
      %p226 = por %p224, %p225
      %p227 = scmp.ne.s32.totalorder %s216, %s217
      %p228 = scmp.eq.s32.totalorder %s26, 0
      %p229 = por %p227, %p228
      %p230 = scmp.ne.s32.totalorder %s216, %s217
      %p231 = scmp.eq.s32.totalorder %s27, 1
      %p232 = por %p230, %p231
      %p234 = scmp.ne.s32.totalorder %s217, %s233
      %p235 = scmp.eq.s32.totalorder %s27, 0
      %p236 = por %p234, %p235
      %s237 = ssub.s32 %s21, %s28
      %p238 = scmp.eq.s32.totalorder %s237, 0
      %s240 = sadd.s32 %s239, 1
      %s241 = scalar_select %p238, %s239, %s240
      %p244 = pneg %p238
      %p245 = scmp.eq.s32.totalorder %s21, 1
      %p246 = por %p244, %p245
      %p247 = scmp.ne.s32.totalorder %s239, %s242
      %p248 = scmp.eq.s32.totalorder %s21, 0
      %p249 = por %p247, %p248
      %p250 = scmp.ne.s32.totalorder %s239, %s242
      %p251 = scmp.eq.s32.totalorder %s26, 1
      %p252 = por %p250, %p251
      %p253 = scmp.ne.s32.totalorder %s242, %s243
      %p254 = scmp.eq.s32.totalorder %s26, 0
      %p255 = por %p253, %p254
      %p256 = scmp.ne.s32.totalorder %s242, %s243
      %p257 = scmp.eq.s32.totalorder %s27, 1
      %p258 = por %p256, %p257
      %p260 = scmp.ne.s32.totalorder %s243, %s259
      %p261 = scmp.eq.s32.totalorder %s27, 0
      %p262 = por %p260, %p261
      %p263 = scmp.le.s32.totalorder 1, %s21
      %p264 = scmp.lt.s32.totalorder %s21, 3
      %p265 = pnand %p263, %p264
      %p266 = pneg %p265
      // Predicated region
      $region9: #{tpu_custom_call.1} parent=5 // pred_check
        _
      $region10: #{tpu_custom_call.1} parent=5 // pred_check_branch
        %268 = sbr.rel (%p265) target = $region12
      $region11: #{tpu_custom_call.1} parent=5 // pred_region
        %s269 = ssub.s32 %s21, 1
      $region12: #{tpu_custom_call.1} parent=5 // pred_fallthru
        _
      %p270 = scmp.lt.s32.totalorder %s21, 2
      // Predicated region
      $region13: #{tpu_custom_call.1} parent=5 // pred_check
        %p271 = pneg %p270
      $region14: #{tpu_custom_call.1} parent=5 // pred_check_branch
        %273 = sbr.rel (%p271) target = $region16
      $region15: #{tpu_custom_call.1} parent=5 // pred_region
        // Predicated region
        $region17: #{tpu_custom_call.1} parent=15 // pred_check
          %p274 = pneg %p41
        $region18: #{tpu_custom_call.1} parent=15 // pred_check_branch
          %276 = sbr.rel (%p274) target = $region20
        $region19: #{tpu_custom_call.1} parent=15 // pred_region
          %p277 = scmp.lt.s32.totalorder %s21, 1
          %s278 = scalar_select %p277, %s21, 1
          %s279 = smul.addr %s278, 4
          %s280 = smul.addr %s279, 4
          %s281 = scalar_lea.vmem %s0, %s280
        $region20: #{tpu_custom_call.1} parent=15 // pred_fallthru
          _
        // Predicated region
        $region21: #{tpu_custom_call.1} parent=15 // pred_check
          %p282 = pneg %p67
        $region22: #{tpu_custom_call.1} parent=15 // pred_check_branch
          %284 = sbr.rel (%p282) target = $region24
        $region23: #{tpu_custom_call.1} parent=15 // pred_region
          %p285 = scmp.lt.s32.totalorder %s21, 1
          %s286 = scalar_select %p285, %s21, 1
          %s287 = smul.addr %s286, 4
          %s288 = smul.addr %s287, 4
          %s289 = scalar_lea.vmem %s1, %s288
        $region24: #{tpu_custom_call.1} parent=15 // pred_fallthru
          _
        // Predicated region
        $region25: #{tpu_custom_call.1} parent=15 // pred_check
          %p290 = pneg %p93
        $region26: #{tpu_custom_call.1} parent=15 // pred_check_branch
          %292 = sbr.rel (%p290) target = $region28
        $region27: #{tpu_custom_call.1} parent=15 // pred_region
          %p293 = scmp.lt.s32.totalorder %s21, 1
          %s294 = scalar_select %p293, %s21, 1
          %s295 = smul.addr %s294, 4
          %s296 = smul.addr %s295, 4
          %s297 = scalar_lea.vmem %s2, %s296
        $region28: #{tpu_custom_call.1} parent=15 // pred_fallthru
          _
        // Predicated region
        $region29: #{tpu_custom_call.1} parent=15 // pred_check
          %p298 = pneg %p119
        $region30: #{tpu_custom_call.1} parent=15 // pred_check_branch
          %300 = sbr.rel (%p298) target = $region32
        $region31: #{tpu_custom_call.1} parent=15 // pred_region
          %p301 = scmp.lt.s32.totalorder %s21, 1
          %s302 = scalar_select %p301, %s21, 1
          %s303 = smul.addr %s302, 4
          %s304 = smul.addr %s303, 4
          %s305 = scalar_lea.vmem %s3, %s304
        $region32: #{tpu_custom_call.1} parent=15 // pred_fallthru
          _
        // Predicated region
        $region33: #{tpu_custom_call.1} parent=15 // pred_check
          %p306 = pneg %p145
        $region34: #{tpu_custom_call.1} parent=15 // pred_check_branch
          %308 = sbr.rel (%p306) target = $region36
        $region35: #{tpu_custom_call.1} parent=15 // pred_region
          %p309 = scmp.lt.s32.totalorder %s21, 1
          %s310 = scalar_select %p309, %s21, 1
          %s311 = smul.addr %s310, 8
          %s312 = smul.addr %s311, 4
          %s313 = scalar_lea.vmem %s4, %s312
        $region36: #{tpu_custom_call.1} parent=15 // pred_fallthru
          _
        // Predicated region
        $region37: #{tpu_custom_call.1} parent=15 // pred_check
          %p314 = pneg %p171
        $region38: #{tpu_custom_call.1} parent=15 // pred_check_branch
          %316 = sbr.rel (%p314) target = $region40
        $region39: #{tpu_custom_call.1} parent=15 // pred_region
          %p317 = scmp.lt.s32.totalorder %s21, 1
          %s318 = scalar_select %p317, %s21, 1
          %s319 = smul.addr %s318, 8
          %s320 = smul.addr %s319, 4
          %s321 = scalar_lea.vmem %s5, %s320
        $region40: #{tpu_custom_call.1} parent=15 // pred_fallthru
          _
      $region16: #{tpu_custom_call.1} parent=5 // pred_fallthru
        _
      %p322 = scmp.le.s32.totalorder 1, %s21
      %p323 = scmp.lt.s32.totalorder %s21, 3
      %p324 = pnand %p322, %p323
      %p325 = pneg %p324
      // Predicated region
      $region41: #{tpu_custom_call.1} parent=5 // pred_check
        _
      $region42: #{tpu_custom_call.1} parent=5 // pred_check_branch
        %327 = sbr.rel (%p324) target = $region44
      $region43: #{tpu_custom_call.1} parent=5 // pred_region
        %s328 = ssub.s32 %s21, 1
        %p329 = scmp.lt.s32.totalorder %s26, 1
        %s330 = scalar_select %p329, %s26, 1
        %s331 = smul.addr %s330, 4
        %s332 = smul.addr %s331, 4
        %s333 = scalar_lea.vmem %s0, %s332
        %p334 = pneg %p47
        %p335 = pneg %p44
        %p336 = scmp.lt.s32.totalorder %s26, 1
        %s337 = scalar_select %p336, %s26, 1
        %s338 = smul.addr %s337, 4
        %s339 = smul.addr %s338, 4
        %s340 = scalar_lea.vmem %s1, %s339
        %p341 = pneg %p73
        %p342 = pneg %p70
        %p343 = scmp.lt.s32.totalorder %s26, 1
        %s344 = scalar_select %p343, %s26, 1
        %s345 = smul.addr %s344, 4
        %s346 = smul.addr %s345, 4
        %s347 = scalar_lea.vmem %s2, %s346
        %p348 = pneg %p99
        %p349 = pneg %p96
        %p350 = scmp.lt.s32.totalorder %s26, 1
        %s351 = scalar_select %p350, %s26, 1
        %s352 = smul.addr %s351, 4
        %s353 = smul.addr %s352, 4
        %s354 = scalar_lea.vmem %s3, %s353
        %p355 = pneg %p125
        %p356 = pneg %p122
        %p357 = scmp.lt.s32.totalorder %s26, 1
        %s358 = scalar_select %p357, %s26, 1
        %s359 = smul.addr %s358, 8
        %s360 = smul.addr %s359, 4
        %s361 = scalar_lea.vmem %s4, %s360
        %p362 = pneg %p151
        %p363 = pneg %p148
        %p364 = scmp.lt.s32.totalorder %s26, 1
        %s365 = scalar_select %p364, %s26, 1
        %s366 = smul.addr %s365, 8
        %s367 = smul.addr %s366, 4
        %s368 = scalar_lea.vmem %s5, %s367
        %p369 = pneg %p177
        %p370 = pneg %p174
        %p371 = pneg %p203
        %p372 = pneg %p200
        %s373 = sand.u32 %s190, 1
        %s374 = scalar_lea.sflag [#allocation3], %s373
        %s375 = sand.u32 %s190, 1
        %s376 = smul.addr %s375, 2
        %s377 = scalar_lea.vmem [#allocation2], %s376
        %p378 = pneg %p229
        %p379 = pneg %p226
        %s380 = sand.u32 %s26, 1
        %s381 = scalar_lea.sflag [#allocation5], %s380
        %s382 = sand.u32 %s216, 1
        %s383 = scalar_lea.vmem [#allocation4], %s382
        %p384 = pneg %p255
        %p385 = pneg %p252
        %s386 = sand.u32 %s26, 1
        %s387 = scalar_lea.sflag [#allocation5], %s386
        %s388 = sand.u32 %s242, 1
        %s389 = scalar_lea.vmem [#allocation6], %s388
        %p390 = scmp.lt.s32.totalorder %s26, 1
        %s391 = scalar_select %p390, %s26, 1
        %s392 = smul.addr %s391, 4
        %s393 = smul.addr %s392, 4
        %s394 = scalar_lea.vmem %s0, %s393
        %p395 = scmp.lt.s32.totalorder %s26, 1
        %s396 = scalar_select %p395, %s26, 1
        %s397 = smul.addr %s396, 4
        %s398 = smul.addr %s397, 4
        %s399 = scalar_lea.vmem %s1, %s398
        %p400 = scmp.lt.s32.totalorder %s26, 1
        %s401 = scalar_select %p400, %s26, 1
        %s402 = smul.addr %s401, 4
        %s403 = smul.addr %s402, 4
        %s404 = scalar_lea.vmem %s2, %s403
        %p405 = scmp.lt.s32.totalorder %s26, 1
        %s406 = scalar_select %p405, %s26, 1
        %s407 = smul.addr %s406, 4
        %s408 = smul.addr %s407, 4
        %s409 = scalar_lea.vmem %s3, %s408
        %p410 = scmp.lt.s32.totalorder %s26, 1
        %s411 = scalar_select %p410, %s26, 1
        %s412 = smul.addr %s411, 8
        %s413 = smul.addr %s412, 4
        %s414 = scalar_lea.vmem %s4, %s413
        %p415 = scmp.lt.s32.totalorder %s26, 1
        %s416 = scalar_select %p415, %s26, 1
        %s417 = smul.addr %s416, 8
        %s418 = smul.addr %s417, 4
        %s419 = scalar_lea.vmem %s5, %s418
        %v420 = vld [vmem:[%s394] sm:$0xff]
        %v421 = vld [vmem:[%s394 + $0x8] sm:$0xff]
        %v422 = vunpack.c.l.bf16 %v420
        %v423 = vunpack.c.h.bf16 %v420
        %v424 = vunpack.c.l.bf16 %v421
        %v425 = vunpack.c.h.bf16 %v421
        %v426 = vld [vmem:[%s399] sm:$0xff]
        %v427 = vld [vmem:[%s399 + $0x8] sm:$0xff]
        %v428 = vunpack.c.l.bf16 %v426
        %v429 = vunpack.c.h.bf16 %v426
        %v430 = vunpack.c.l.bf16 %v427
        %v431 = vunpack.c.h.bf16 %v427
        %v432 = vmul.f32 %v422, %v428
        %v433 = vmul.f32 %v423, %v429
        %v434 = vmul.f32 %v424, %v430
        %v435 = vmul.f32 %v425, %v431
        %v436 = vadd.f32 %v432, %v434
        %v437 = vrot.slane %v436, 4
        %v438 = vadd.f32 %v436, %v437
        %v439 = vrot.slane %v438, 2
        %v440 = vadd.f32 %v438, %v439
        %v441 = vrot.slane %v440, 1
        %v442 = vadd.f32 %v440, %v441
        %v443 = vadd.f32 %v433, %v435
        %v444 = vrot.slane %v443, 4
        %v445 = vadd.f32 %v443, %v444
        %v446 = vrot.slane %v445, 2
        %v447 = vadd.f32 %v445, %v446
        %v448 = vrot.slane %v447, 1
        %v449 = vadd.f32 %v447, %v448
        %v450 = vmul.f32 %v422, %v422
        %v451 = vmul.f32 %v423, %v423
        %v452 = vmul.f32 %v424, %v424
        %v453 = vmul.f32 %v425, %v425
        %v454 = vadd.f32 %v450, %v452
        %v455 = vrot.slane %v454, 4
        %v456 = vadd.f32 %v454, %v455
        %v457 = vrot.slane %v456, 2
        %v458 = vadd.f32 %v456, %v457
        %v459 = vrot.slane %v458, 1
        %v460 = vadd.f32 %v458, %v459
        %v461 = vadd.f32 %v451, %v453
        %v462 = vrot.slane %v461, 4
        %v463 = vadd.f32 %v461, %v462
        %v464 = vrot.slane %v463, 2
        %v465 = vadd.f32 %v463, %v464
        %v466 = vrot.slane %v465, 1
        %v467 = vadd.f32 %v465, %v466
        %v468 = vmul.f32 %v428, %v428
        %v469 = vmul.f32 %v429, %v429
        %v470 = vmul.f32 %v430, %v430
        %v471 = vmul.f32 %v431, %v431
        %v472 = vadd.f32 %v468, %v470
        %v473 = vrot.slane %v472, 4
        %v474 = vadd.f32 %v472, %v473
        %v475 = vrot.slane %v474, 2
        %v476 = vadd.f32 %v474, %v475
        %v477 = vrot.slane %v476, 1
        %v478 = vadd.f32 %v476, %v477
        %v479 = vadd.f32 %v469, %v471
        %v480 = vrot.slane %v479, 4
        %v481 = vadd.f32 %v479, %v480
        %v482 = vrot.slane %v481, 2
        %v483 = vadd.f32 %v481, %v482
        %v484 = vrot.slane %v483, 1
        %v485 = vadd.f32 %v483, %v484
        %v486 = vmul.f32 %v460, %v478
        %v487 = vmul.f32 %v467, %v485
        %v488 = vmax.f32 %v486, 1e-16
        %v489 = vmax.f32 %v487, 1e-16
        %v490 = vrsqrt.pop %v488
        %v491 = vmul.f32 %v490, %v488
        %v492 = vmul.f32 %v491, %v490
        %v493 = vmul.f32 0.5, %v492
        %v494 = vsub.f32 1.5, %v493
        %v495 = vmul.f32 %v490, %v494
        %vm496 = vweird.f32 %v488
        %vm497 = vweird.f32 %v490
        %vm498 = vmor %vm496, %vm497
        %v499 = vsel %vm498, %v490, %v495
        %v500 = vrsqrt.pop %v489
        %v501 = vmul.f32 %v500, %v489
        %v502 = vmul.f32 %v501, %v500
        %v503 = vmul.f32 0.5, %v502
        %v504 = vsub.f32 1.5, %v503
        %v505 = vmul.f32 %v500, %v504
        %vm506 = vweird.f32 %v489
        %vm507 = vweird.f32 %v500
        %vm508 = vmor %vm506, %vm507
        %v509 = vsel %vm508, %v500, %v505
        %v510 = vmul.f32 %v442, %v499
        %v511 = vmul.f32 %v449, %v509
        %v512 = vsub.f32 1.0, %v510
        %v513 = vsub.f32 1.0, %v511
        %v516 = vrot.slane %v513, 7
        %vm517 = vcmask 1040384
        %v518 = vsel %vm517, %v512, %v516
        %v520 = vlaneseq
        %vm521 = vcmp.ge.s32.totalorder %v520, 0
        %vm522 = vcmp.lt.s32.totalorder %v520, 256
        %vm523 = vmand %vm521, %vm522
        %524 = vst.msk [vmem:[%s377] sm:$0x3] %vm523, %v518
        %v525 = vld [vmem:[%s404] sm:$0xf]
        %v526 = vld [vmem:[%s404 + $0x4] sm:$0xf]
        %v527 = vld [vmem:[%s404 + $0x8] sm:$0xf]
        %v528 = vld [vmem:[%s404 + $0xc] sm:$0xf]
        %v529 = vunpack.c.l.bf16 %v525
        %v530 = vunpack.c.l.bf16 %v526
        %v531 = vunpack.c.l.bf16 %v527
        %v532 = vunpack.c.l.bf16 %v528
        %v533 = vld [vmem:[%s409] sm:$0xf]
        %v534 = vld [vmem:[%s409 + $0x4] sm:$0xf]
        %v535 = vld [vmem:[%s409 + $0x8] sm:$0xf]
        %v536 = vld [vmem:[%s409 + $0xc] sm:$0xf]
        %v537 = vunpack.c.l.bf16 %v533
        %v538 = vunpack.c.l.bf16 %v534
        %v539 = vunpack.c.l.bf16 %v535
        %v540 = vunpack.c.l.bf16 %v536
        %v541 = vmul.f32 %v529, %v537
        %v542 = vmul.f32 %v530, %v538
        %v543 = vmul.f32 %v531, %v539
        %v544 = vmul.f32 %v532, %v540
        %vm545 = vcmask 523264
        %v546 = vsel %vm545, %v541, 0.0
        %v547 = vsel %vm545, %v542, 0.0
        %v548 = vadd.f32 %v546, %v547
        %v549 = vsel %vm545, %v543, 0.0
        %v550 = vadd.f32 %v548, %v549
        %v551 = vsel %vm545, %v544, 0.0
        %v552 = vadd.f32 %v550, %v551
        %v553 = vrot.slane %v552, 4
        %v554 = vadd.f32 %v552, %v553
        %v555 = vrot.slane %v554, 2
        %v556 = vadd.f32 %v554, %v555
        %v557 = vrot.slane %v556, 1
        %v558 = vadd.f32 %v556, %v557
        %v559 = vmul.f32 %v529, %v529
        %v560 = vmul.f32 %v530, %v530
        %v561 = vmul.f32 %v531, %v531
        %v562 = vmul.f32 %v532, %v532
        %v563 = vsel %vm545, %v559, 0.0
        %v564 = vsel %vm545, %v560, 0.0
        %v565 = vadd.f32 %v563, %v564
        %v566 = vsel %vm545, %v561, 0.0
        %v567 = vadd.f32 %v565, %v566
        %v568 = vsel %vm545, %v562, 0.0
        %v569 = vadd.f32 %v567, %v568
        %v570 = vrot.slane %v569, 4
        %v571 = vadd.f32 %v569, %v570
        %v572 = vrot.slane %v571, 2
        %v573 = vadd.f32 %v571, %v572
        %v574 = vrot.slane %v573, 1
        %v575 = vadd.f32 %v573, %v574
        %v576 = vmul.f32 %v537, %v537
        %v577 = vmul.f32 %v538, %v538
        %v578 = vmul.f32 %v539, %v539
        %v579 = vmul.f32 %v540, %v540
        %v580 = vsel %vm545, %v576, 0.0
        %v581 = vsel %vm545, %v577, 0.0
        %v582 = vadd.f32 %v580, %v581
        %v583 = vsel %vm545, %v578, 0.0
        %v584 = vadd.f32 %v582, %v583
        %v585 = vsel %vm545, %v579, 0.0
        %v586 = vadd.f32 %v584, %v585
        %v587 = vrot.slane %v586, 4
        %v588 = vadd.f32 %v586, %v587
        %v589 = vrot.slane %v588, 2
        %v590 = vadd.f32 %v588, %v589
        %v591 = vrot.slane %v590, 1
        %v592 = vadd.f32 %v590, %v591
        %v593 = vmul.f32 %v575, %v592
        %v594 = vmax.f32 %v593, 1e-16
        %v595 = vrsqrt.pop %v594
        %v596 = vmul.f32 %v595, %v594
        %v597 = vmul.f32 %v596, %v595
        %v598 = vmul.f32 0.5, %v597
        %v599 = vsub.f32 1.5, %v598
        %v600 = vmul.f32 %v595, %v599
        %vm601 = vweird.f32 %v594
        %vm602 = vweird.f32 %v595
        %vm603 = vmor %vm601, %vm602
        %v604 = vsel %vm603, %v595, %v600
        %v605 = vmul.f32 %v558, %v604
        %v606 = vsub.f32 1.0, %v605
        %vm607 = vcmask 516096
        %608 = vst.msk [vmem:[%s383] sm:$0x1] %vm607, %v606
        %v609 = vld [vmem:[%s414] sm:$0xf]
        %v610 = vld [vmem:[%s414 + $0x4] sm:$0xf]
        %v611 = vld [vmem:[%s414 + $0x8] sm:$0xf]
        %v612 = vld [vmem:[%s414 + $0xc] sm:$0xf]
        %v613 = vld [vmem:[%s414 + $0x10] sm:$0xf]
        %v614 = vld [vmem:[%s414 + $0x14] sm:$0xf]
        %v615 = vld [vmem:[%s414 + $0x18] sm:$0xf]
        %v616 = vld [vmem:[%s414 + $0x1c] sm:$0xf]
        %v617 = vunpack.c.l.bf16 %v609
        %v618 = vunpack.c.l.bf16 %v610
        %v619 = vunpack.c.l.bf16 %v611
        %v620 = vunpack.c.l.bf16 %v612
        %v621 = vunpack.c.l.bf16 %v613
        %v622 = vunpack.c.l.bf16 %v614
        %v623 = vunpack.c.l.bf16 %v615
        %v624 = vunpack.c.l.bf16 %v616
        %v625 = vld [vmem:[%s419] sm:$0xf]
        %v626 = vld [vmem:[%s419 + $0x4] sm:$0xf]
        %v627 = vld [vmem:[%s419 + $0x8] sm:$0xf]
        %v628 = vld [vmem:[%s419 + $0xc] sm:$0xf]
        %v629 = vld [vmem:[%s419 + $0x10] sm:$0xf]
        %v630 = vld [vmem:[%s419 + $0x14] sm:$0xf]
        %v631 = vld [vmem:[%s419 + $0x18] sm:$0xf]
        %v632 = vld [vmem:[%s419 + $0x1c] sm:$0xf]
        %v633 = vunpack.c.l.bf16 %v625
        %v634 = vunpack.c.l.bf16 %v626
        %v635 = vunpack.c.l.bf16 %v627
        %v636 = vunpack.c.l.bf16 %v628
        %v637 = vunpack.c.l.bf16 %v629
        %v638 = vunpack.c.l.bf16 %v630
        %v639 = vunpack.c.l.bf16 %v631
        %v640 = vunpack.c.l.bf16 %v632
        %v641 = vmul.f32 %v617, %v633
        %v642 = vmul.f32 %v618, %v634
        %v643 = vmul.f32 %v619, %v635
        %v644 = vmul.f32 %v620, %v636
        %v645 = vmul.f32 %v621, %v637
        %v646 = vmul.f32 %v622, %v638
        %v647 = vmul.f32 %v623, %v639
        %v648 = vmul.f32 %v624, %v640
        %vm649 = vcmask 130048
        %v650 = vsel %vm649, %v641, 0.0
        %v651 = vsel %vm649, %v642, 0.0
        %v652 = vadd.f32 %v650, %v651
        %v653 = vsel %vm649, %v643, 0.0
        %v654 = vadd.f32 %v652, %v653
        %v655 = vsel %vm649, %v644, 0.0
        %v656 = vadd.f32 %v654, %v655
        %v657 = vsel %vm649, %v645, 0.0
        %v658 = vadd.f32 %v656, %v657
        %v659 = vsel %vm649, %v646, 0.0
        %v660 = vadd.f32 %v658, %v659
        %v661 = vsel %vm649, %v647, 0.0
        %v662 = vadd.f32 %v660, %v661
        %v663 = vsel %vm649, %v648, 0.0
        %v664 = vadd.f32 %v662, %v663
        %v665 = vrot.slane %v664, 4
        %v666 = vadd.f32 %v664, %v665
        %v667 = vrot.slane %v666, 2
        %v668 = vadd.f32 %v666, %v667
        %v669 = vrot.slane %v668, 1
        %v670 = vadd.f32 %v668, %v669
        %v671 = vmul.f32 %v617, %v617
        %v672 = vmul.f32 %v618, %v618
        %v673 = vmul.f32 %v619, %v619
        %v674 = vmul.f32 %v620, %v620
        %v675 = vmul.f32 %v621, %v621
        %v676 = vmul.f32 %v622, %v622
        %v677 = vmul.f32 %v623, %v623
        %v678 = vmul.f32 %v624, %v624
        %v679 = vsel %vm649, %v671, 0.0
        %v680 = vsel %vm649, %v672, 0.0
        %v681 = vadd.f32 %v679, %v680
        %v682 = vsel %vm649, %v673, 0.0
        %v683 = vadd.f32 %v681, %v682
        %v684 = vsel %vm649, %v674, 0.0
        %v685 = vadd.f32 %v683, %v684
        %v686 = vsel %vm649, %v675, 0.0
        %v687 = vadd.f32 %v685, %v686
        %v688 = vsel %vm649, %v676, 0.0
        %v689 = vadd.f32 %v687, %v688
        %v690 = vsel %vm649, %v677, 0.0
        %v691 = vadd.f32 %v689, %v690
        %v692 = vsel %vm649, %v678, 0.0
        %v693 = vadd.f32 %v691, %v692
        %v694 = vrot.slane %v693, 4
        %v695 = vadd.f32 %v693, %v694
        %v696 = vrot.slane %v695, 2
        %v697 = vadd.f32 %v695, %v696
        %v698 = vrot.slane %v697, 1
        %v699 = vadd.f32 %v697, %v698
        %v700 = vmul.f32 %v633, %v633
        %v701 = vmul.f32 %v634, %v634
        %v702 = vmul.f32 %v635, %v635
        %v703 = vmul.f32 %v636, %v636
        %v704 = vmul.f32 %v637, %v637
        %v705 = vmul.f32 %v638, %v638
        %v706 = vmul.f32 %v639, %v639
        %v707 = vmul.f32 %v640, %v640
        %v708 = vsel %vm649, %v700, 0.0
        %v709 = vsel %vm649, %v701, 0.0
        %v710 = vadd.f32 %v708, %v709
        %v711 = vsel %vm649, %v702, 0.0
        %v712 = vadd.f32 %v710, %v711
        %v713 = vsel %vm649, %v703, 0.0
        %v714 = vadd.f32 %v712, %v713
        %v715 = vsel %vm649, %v704, 0.0
        %v716 = vadd.f32 %v714, %v715
        %v717 = vsel %vm649, %v705, 0.0
        %v718 = vadd.f32 %v716, %v717
        %v719 = vsel %vm649, %v706, 0.0
        %v720 = vadd.f32 %v718, %v719
        %v721 = vsel %vm649, %v707, 0.0
        %v722 = vadd.f32 %v720, %v721
        %v723 = vrot.slane %v722, 4
        %v724 = vadd.f32 %v722, %v723
        %v725 = vrot.slane %v724, 2
        %v726 = vadd.f32 %v724, %v725
        %v727 = vrot.slane %v726, 1
        %v728 = vadd.f32 %v726, %v727
        %v729 = vmul.f32 %v699, %v728
        %v730 = vmax.f32 %v729, 1e-16
        %v731 = vrsqrt.pop %v730
        %v732 = vmul.f32 %v731, %v730
        %v733 = vmul.f32 %v732, %v731
        %v734 = vmul.f32 0.5, %v733
        %v735 = vsub.f32 1.5, %v734
        %v736 = vmul.f32 %v731, %v735
        %vm737 = vweird.f32 %v730
        %vm738 = vweird.f32 %v731
        %vm739 = vmor %vm737, %vm738
        %v740 = vsel %vm739, %v731, %v736
        %v741 = vmul.f32 %v670, %v740
        %v742 = vsub.f32 1.0, %v741
        %vm743 = vcmask 122880
        %744 = vst.msk [vmem:[%s389] sm:$0x1] %vm743, %v742
        %s745 = sand.u32 %s190, 1
        %s746 = scalar_lea.sflag [#allocation3], %s745
        %s747 = sand.u32 %s190, 1
        %s748 = smul.addr %s747, 2
        %s749 = scalar_lea.vmem [#allocation2], %s748
        %s750 = sand.u32 %s26, 1
        %s751 = scalar_lea.sflag [#allocation5], %s750
        %s752 = sand.u32 %s216, 1
        %s753 = scalar_lea.vmem [#allocation4], %s752
        %s754 = sand.u32 %s26, 1
        %s755 = scalar_lea.sflag [#allocation5], %s754
        %s756 = sand.u32 %s242, 1
        %s757 = scalar_lea.vmem [#allocation6], %s756
        // Predicated region
        $region45: #{tpu_custom_call.1} parent=43 // pred_check
          %p758 = pneg %p200
        $region46: #{tpu_custom_call.1} parent=43 // pred_check_branch
          %760 = sbr.rel (%p758) target = $region48
        $region47: #{tpu_custom_call.1} parent=43 // pred_region
          %762 = vsyncadd %s746, 0
          %s763 = smul.addr %s26, 2
          %s764 = scalar_lea.hbm %s6, %s763
          %s766 = sshll.u32 %s749, 4
          %s767 = int_to_ptr.vmem [resolvable:$true] %s766
          %s768 = sshll.u32 %s764, 4
          %s769 = int_to_ptr.hbm [resolvable:$true] %s768
          %771 = dma.vmem_to_hbm [thread:$0]  %s767, 32, %s769, %s746
        $region48: #{tpu_custom_call.1} parent=43 // pred_fallthru
          _
        // Predicated region
        $region49: #{tpu_custom_call.1} parent=43 // pred_check
          %p772 = pneg %p226
        $region50: #{tpu_custom_call.1} parent=43 // pred_check_branch
          %774 = sbr.rel (%p772) target = $region52
        $region51: #{tpu_custom_call.1} parent=43 // pred_region
          %776 = vsyncadd %s751, 0
          %s777 = scalar_lea.hbm %s7, %s26
          %s779 = sshll.u32 %s753, 4
          %s780 = int_to_ptr.vmem [resolvable:$true] %s779
          %s781 = sshll.u32 %s777, 4
          %s782 = int_to_ptr.hbm [resolvable:$true] %s781
          %784 = dma.vmem_to_hbm [thread:$0]  %s780, 16, %s782, %s751
        $region52: #{tpu_custom_call.1} parent=43 // pred_fallthru
          _
        // Predicated region
        $region53: #{tpu_custom_call.1} parent=43 // pred_check
          %p785 = pneg %p252
        $region54: #{tpu_custom_call.1} parent=43 // pred_check_branch
          %787 = sbr.rel (%p785) target = $region56
        $region55: #{tpu_custom_call.1} parent=43 // pred_region
          %789 = vsyncadd %s755, 0
          %s790 = scalar_lea.hbm %s8, %s26
          %s792 = sshll.u32 %s757, 4
          %s793 = int_to_ptr.vmem [resolvable:$true] %s792
          %s794 = sshll.u32 %s790, 4
          %s795 = int_to_ptr.hbm [resolvable:$true] %s794
          %797 = dma.vmem_to_hbm [thread:$0]  %s793, 16, %s795, %s755
        $region56: #{tpu_custom_call.1} parent=43 // pred_fallthru
          _
      $region44: #{tpu_custom_call.1} parent=5 // pred_fallthru
        _
      %p798 = scmp.le.s32.totalorder 2, %s21
      // Predicated region
      $region57: #{tpu_custom_call.1} parent=5 // pred_check
        %p799 = pneg %p798
      $region58: #{tpu_custom_call.1} parent=5 // pred_check_branch
        %801 = sbr.rel (%p799) target = $region60
      $region59: #{tpu_custom_call.1} parent=5 // pred_region
        %s802 = ssub.s32 %s21, 2
        // Predicated region
        $region61: #{tpu_custom_call.1} parent=59 // pred_check
          %p803 = pneg %p206
        $region62: #{tpu_custom_call.1} parent=59 // pred_check_branch
          %805 = sbr.rel (%p803) target = $region64
        $region63: #{tpu_custom_call.1} parent=59 // pred_region
          %s806 = sand.u32 %s191, 1
          %s807 = scalar_lea.sflag [#allocation3], %s806
          %s808 = sand.u32 %s191, 1
          %s809 = smul.addr %s808, 2
          %s810 = scalar_lea.vmem [#allocation2], %s809
          %812 = dma.done %s807, 32
        $region64: #{tpu_custom_call.1} parent=59 // pred_fallthru
          _
        // Predicated region
        $region65: #{tpu_custom_call.1} parent=59 // pred_check
          %p813 = pneg %p232
        $region66: #{tpu_custom_call.1} parent=59 // pred_check_branch
          %815 = sbr.rel (%p813) target = $region68
        $region67: #{tpu_custom_call.1} parent=59 // pred_region
          %s816 = sand.u32 %s27, 1
          %s817 = scalar_lea.sflag [#allocation5], %s816
          %s818 = sand.u32 %s217, 1
          %s819 = scalar_lea.vmem [#allocation4], %s818
          %821 = dma.done %s817, 16
        $region68: #{tpu_custom_call.1} parent=59 // pred_fallthru
          _
        // Predicated region
        $region69: #{tpu_custom_call.1} parent=59 // pred_check
          %p822 = pneg %p258
        $region70: #{tpu_custom_call.1} parent=59 // pred_check_branch
          %824 = sbr.rel (%p822) target = $region72
        $region71: #{tpu_custom_call.1} parent=59 // pred_region
          %s825 = sand.u32 %s27, 1
          %s826 = scalar_lea.sflag [#allocation5], %s825
          %s827 = sand.u32 %s243, 1
          %s828 = scalar_lea.vmem [#allocation6], %s827
          %830 = dma.done %s826, 16
        $region72: #{tpu_custom_call.1} parent=59 // pred_fallthru
          _
      $region60: #{tpu_custom_call.1} parent=5 // pred_fallthru
        _
    $region6: #{tpu_custom_call.1} parent=1 // loop_footer
      %s25 = sadd.s32 1, %s21
    $region7: #{tpu_custom_call.1} parent=1 // loop_footer_branch
      %20 = sbr.rel target = $region3
    $region8: #{tpu_custom_call.1} parent=1 // loop_exit
      _
    %831 = vsyncpa [#allocation3], 1
    %s832 = scalar_lea.sflag [#allocation3], 1
    %833 = vsyncpa %s832, 1
    %834 = vsyncpa [#allocation5], 1
    %s835 = scalar_lea.sflag [#allocation5], 1
    %836 = vsyncpa %s835, 1

</llo_original>
